<compile_context>
chip_gen: v6e
topology: v6e:2x2x1
jax: 0.10.0
libtpu: 0.0.40
codegen_flags: <defaults>
</compile_context>

<pallas_src>
import jax
import jax.numpy as jnp
from jax.experimental import pallas as pl
from jax.experimental.pallas import tpu as pltpu


def _round_up(n: int, m: int) -> int:
    return ((n + m - 1) // m) * m


def _policy_forward_kernel(x_ref, w1_ref, b1_ref, w2_ref, b2_ref, out_ref):
    # state_projection + ReLU (MXU, f32 accumulate)
    h = jnp.dot(x_ref[...], w1_ref[...], preferred_element_type=jnp.float32)
    h = jnp.maximum(h + b1_ref[...], 0.0)

    # action_head
    logits = jnp.dot(h, w2_ref[...], preferred_element_type=jnp.float32) + b2_ref[...]

    if out_ref.shape[-1] == 2:
        # Closed-form 2-class softmax: p1 = sigmoid(l1 - l0), p0 = 1 - p1.
        # Numerically stable sigmoid (single exp on the EUP, no XLU reduces).
        d = logits[:, 1:2] - logits[:, 0:1]            # (TB, 1)
        z = jnp.exp(-jnp.abs(d))                       # EUP
        p1 = jnp.where(d >= 0, 1.0, z) / (1.0 + z)     # VPU select + divide
        p0 = 1.0 - p1
        lane = jax.lax.broadcasted_iota(jnp.int32, out_ref.shape, 1)
        out_ref[...] = jnp.where(lane == 1, p1, p0).astype(out_ref.dtype)
    else:
        # Generic numerically-stable softmax fallback.
        m = jnp.max(logits, axis=-1, keepdims=True)
        e = jnp.exp(logits - m)
        out_ref[...] = (e / jnp.sum(e, axis=-1, keepdims=True)).astype(out_ref.dtype)


def policy_forward(x, w1, b1, w2, b2, *, block_b: int = 512):
    """Full Policy forward pass (Linear -> ReLU -> Linear -> softmax).

    Args:
        x:  (B, state_dim) float32
        w1: (state_dim, h_size) float32   (transposed vs. PyTorch's (out, in))
        b1: (1, h_size) float32
        w2: (h_size, action_dim) float32
        b2: (1, action_dim) float32
        block_b: batch tile size (rounded/capped internally, multiple of 8).
    Returns:
        (B, action_dim) float32 softmax probabilities.
    """
    B, state_dim = x.shape
    action_dim = w2.shape[1]

    # Batch tile: multiple of 8 sublanes, capped so 2x(in+out) buffers stay
    # tiny (TB=512 -> ~24 KB total, fine on v5e/v6e/v7x VMEM budgets).
    tb = min(_round_up(block_b, 8), _round_up(B, 8))
    padded_b = _round_up(B, tb)
    if padded_b != B:
        x = jnp.pad(x, ((0, padded_b - B), (0, 0)))

    grid = (padded_b // tb,)

    def const_spec(a):
        # Constant block index -> DMA'd once, VMEM-resident across grid steps.
        return pl.BlockSpec(a.shape, lambda i: (0,) * a.ndim)

    out = pl.pallas_call(
        _policy_forward_kernel,
        out_shape=jax.ShapeDtypeStruct((padded_b, action_dim), jnp.float32),
        grid=grid,
        in_specs=[
            pl.BlockSpec((tb, state_dim), lambda i: (i, 0)),
            const_spec(w1),
            const_spec(b1),
            const_spec(w2),
            const_spec(b2),
        ],
        out_specs=pl.BlockSpec((tb, action_dim), lambda i: (i, 0)),
        compiler_params=pltpu.CompilerParams(
            dimension_semantics=("parallel",),  # shard batch across TCs on v7x
        ),
    )(x, w1, b1, w2, b2)

    return out[:B] if padded_b != B else out


def _reference_forward(x, w1, b1, w2, b2):
    h = jnp.maximum(x @ w1 + b1, 0.0)
    logits = h @ w2 + b2
    return jax.nn.softmax(logits, axis=1)


if __name__ == "__main__":
    state_dim, action_dim, h_size = 4, 2, 24
    batch = 2

    key = jax.random.PRNGKey(0)
    k_x, k_w1, k_b1, k_w2, k_b2, k_xb = jax.random.split(key, 6)

    # Deterministic parameter init (uniform, roughly matching nn.Linear scale).
    lim1 = 1.0 / (state_dim ** 0.5)
    lim2 = 1.0 / (h_size ** 0.5)
    x = jax.random.normal(k_x, (batch, state_dim), dtype=jnp.float32)
    w1 = jax.random.uniform(k_w1, (state_dim, h_size), jnp.float32, -lim1, lim1)
    b1 = jax.random.uniform(k_b1, (1, h_size), jnp.float32, -lim1, lim1)
    w2 = jax.random.uniform(k_w2, (h_size, action_dim), jnp.float32, -lim2, lim2)
    b2 = jax.random.uniform(k_b2, (1, action_dim), jnp.float32, -lim2, lim2)

    # Small per-step case (typical RL usage).
    probs = policy_forward(x, w1, b1, w2, b2)
    jax.block_until_ready(probs)
    ref = _reference_forward(x, w1, b1, w2, b2)
    assert probs.shape == (batch, action_dim)
    assert jnp.allclose(probs, ref, atol=1e-5, rtol=1e-5)
    assert jnp.allclose(jnp.sum(probs, axis=1), 1.0, atol=1e-5)

    # Larger rollout batch exercising the tiled grid (multiple grid steps,
    # weights resident across iterations).
    big_b = 1024
    xb = jax.random.normal(k_xb, (big_b, state_dim), dtype=jnp.float32)
    probs_b = policy_forward(xb, w1, b1, w2, b2, block_b=256)
    jax.block_until_ready(probs_b)
    ref_b = _reference_forward(xb, w1, b1, w2, b2)
    assert probs_b.shape == (big_b, action_dim)
    assert jnp.allclose(probs_b, ref_b, atol=1e-5, rtol=1e-5)
    assert jnp.allclose(jnp.sum(probs_b, axis=1), 1.0, atol=1e-5)

    print("KERNEL_OK")
</pallas_src>

<mosaic_0001>
module attributes {stable_mosaic.version = 11 : i64} {
  func.func @_policy_forward_kernel(%arg0: i32, %arg1: memref<8x4xf32, #tpu.memory_space<vmem>>, %arg2: memref<4x24xf32, #tpu.memory_space<vmem>>, %arg3: memref<1x24xf32, #tpu.memory_space<vmem>>, %arg4: memref<24x2xf32, #tpu.memory_space<vmem>>, %arg5: memref<1x2xf32, #tpu.memory_space<vmem>>, %arg6: memref<8x2xf32, #tpu.memory_space<vmem>>) attributes {dimension_semantics = [#tpu.dimension_semantics<parallel>], iteration_bounds = array<i64: 1>, scalar_prefetch = 0 : i64, scratch_operands = 0 : i64, tpu.core_type = #tpu.core_type<tc>, window_params = [{transform_indices = @transform_0, window_bounds = array<i64: 8, 4>}, {pipeline_mode = #tpu.pipeline_mode<synchronous>, transform_indices = @transform_1, window_bounds = array<i64: 4, 24>}, {pipeline_mode = #tpu.pipeline_mode<synchronous>, transform_indices = @transform_2, window_bounds = array<i64: 1, 24>}, {pipeline_mode = #tpu.pipeline_mode<synchronous>, transform_indices = @transform_3, window_bounds = array<i64: 24, 2>}, {pipeline_mode = #tpu.pipeline_mode<synchronous>, transform_indices = @transform_4, window_bounds = array<i64: 1, 2>}, {transform_indices = @transform_5, window_bounds = array<i64: 8, 2>}]} {
    %c0 = arith.constant 0 : index
    %c0_0 = arith.constant 0 : index
    %0 = vector.load %arg1[%c0, %c0_0] : memref<8x4xf32, #tpu.memory_space<vmem>>, vector<8x4xf32>
    %c0_1 = arith.constant 0 : index
    %c0_2 = arith.constant 0 : index
    %1 = vector.load %arg2[%c0_1, %c0_2] : memref<4x24xf32, #tpu.memory_space<vmem>>, vector<4x24xf32>
    %cst = arith.constant dense<0.000000e+00> : vector<8x24xf32>
    %2 = tpu.matmul %0, %1, %cst {dimension_numbers = #tpu.dot_dimension_numbers<[1], [0], [0], [1], [0, 0, 1, 1], [], []>} : vector<8x4xf32>, vector<4x24xf32>, vector<8x24xf32> -> vector<8x24xf32>
    %c0_3 = arith.constant 0 : index
    %c0_4 = arith.constant 0 : index
    %3 = vector.load %arg3[%c0_3, %c0_4] : memref<1x24xf32, #tpu.memory_space<vmem>>, vector<1x24xf32>
    %4 = vector.broadcast %3 : vector<1x24xf32> to vector<8x24xf32>
    %5 = arith.addf %2, %4 : vector<8x24xf32>
    %cst_5 = arith.constant 0.000000e+00 : f32
    %6 = vector.broadcast %cst_5 : f32 to vector<8x24xf32>
    %7 = arith.maximumf %5, %6 : vector<8x24xf32>
    %c0_6 = arith.constant 0 : index
    %c0_7 = arith.constant 0 : index
    %8 = vector.load %arg4[%c0_6, %c0_7] : memref<24x2xf32, #tpu.memory_space<vmem>>, vector<24x2xf32>
    %cst_8 = arith.constant dense<0.000000e+00> : vector<8x2xf32>
    %9 = tpu.matmul %7, %8, %cst_8 {dimension_numbers = #tpu.dot_dimension_numbers<[1], [0], [0], [1], [0, 0, 1, 1], [], []>} : vector<8x24xf32>, vector<24x2xf32>, vector<8x2xf32> -> vector<8x2xf32>
    %c0_9 = arith.constant 0 : index
    %c0_10 = arith.constant 0 : index
    %10 = vector.load %arg5[%c0_9, %c0_10] : memref<1x2xf32, #tpu.memory_space<vmem>>, vector<1x2xf32>
    %11 = vector.broadcast %10 : vector<1x2xf32> to vector<8x2xf32>
    %12 = arith.addf %9, %11 : vector<8x2xf32>
    %13 = vector.extract_strided_slice %12 {offsets = [0, 1], sizes = [8, 1], strides = [1, 1]} : vector<8x2xf32> to vector<8x1xf32>
    %14 = vector.extract_strided_slice %12 {offsets = [0, 0], sizes = [8, 1], strides = [1, 1]} : vector<8x2xf32> to vector<8x1xf32>
    %15 = arith.subf %13, %14 : vector<8x1xf32>
    %16 = math.absf %15 : vector<8x1xf32>
    %cst_11 = arith.constant 0.000000e+00 : f32
    %17 = vector.broadcast %cst_11 : f32 to vector<8x1xf32>
    %18 = arith.subf %17, %16 : vector<8x1xf32>
    %19 = math.exp %18 : vector<8x1xf32>
    %cst_12 = arith.constant 0.000000e+00 : f32
    %20 = vector.broadcast %cst_12 : f32 to vector<8x1xf32>
    %21 = arith.cmpf oge, %15, %20 : vector<8x1xf32>
    %cst_13 = arith.constant 1.000000e+00 : f32
    %22 = vector.broadcast %cst_13 : f32 to vector<8x1xf32>
    %23 = arith.select %21, %22, %19 : vector<8x1xi1>, vector<8x1xf32>
    %cst_14 = arith.constant 1.000000e+00 : f32
    %24 = vector.broadcast %cst_14 : f32 to vector<8x1xf32>
    %25 = arith.addf %24, %19 : vector<8x1xf32>
    %26 = arith.divf %23, %25 : vector<8x1xf32>
    %cst_15 = arith.constant 1.000000e+00 : f32
    %27 = vector.broadcast %cst_15 : f32 to vector<8x1xf32>
    %28 = arith.subf %27, %26 : vector<8x1xf32>
    %29 = tpu.iota {dimensions = array<i32: 1>} : vector<8x2xi32>
    %c1_i32 = arith.constant 1 : i32
    %30 = vector.broadcast %c1_i32 : i32 to vector<8x2xi32>
    %31 = arith.cmpi eq, %29, %30 : vector<8x2xi32>
    %32 = vector.shape_cast %26 : vector<8x1xf32> to vector<8x1xf32>
    %33 = vector.broadcast %32 : vector<8x1xf32> to vector<8x2xf32>
    %34 = vector.shape_cast %28 : vector<8x1xf32> to vector<8x1xf32>
    %35 = vector.broadcast %34 : vector<8x1xf32> to vector<8x2xf32>
    %36 = arith.select %31, %33, %35 : vector<8x2xi1>, vector<8x2xf32>
    %c0_16 = arith.constant 0 : index
    %c0_17 = arith.constant 0 : index
    %37 = vector.load %arg6[%c0_16, %c0_17] : memref<8x2xf32, #tpu.memory_space<vmem>>, vector<8x2xf32>
    tpu.vector_store %arg6[%c0_16, %c0_17], %36 {strides = array<i32>} : memref<8x2xf32, #tpu.memory_space<vmem>>, vector<8x2xf32>,
    return
  }
  func.func @transform_0(%arg0: i32) -> (i32, i32) {
    %c0_i32 = arith.constant 0 : i32
    %c0_i32_0 = arith.constant 0 : i32
    return %arg0, %c0_i32 : i32, i32
  }
  func.func @transform_1(%arg0: i32) -> (i32, i32) {
    %c0_i32 = arith.constant 0 : i32
    %c0_i32_0 = arith.constant 0 : i32
    %c0_i32_1 = arith.constant 0 : i32
    return %c0_i32, %c0_i32_0 : i32, i32
  }
  func.func @transform_2(%arg0: i32) -> (i32, i32) {
    %c0_i32 = arith.constant 0 : i32
    %c0_i32_0 = arith.constant 0 : i32
    %c0_i32_1 = arith.constant 0 : i32
    return %c0_i32, %c0_i32_0 : i32, i32
  }
  func.func @transform_3(%arg0: i32) -> (i32, i32) {
    %c0_i32 = arith.constant 0 : i32
    %c0_i32_0 = arith.constant 0 : i32
    %c0_i32_1 = arith.constant 0 : i32
    return %c0_i32, %c0_i32_0 : i32, i32
  }
  func.func @transform_4(%arg0: i32) -> (i32, i32) {
    %c0_i32 = arith.constant 0 : i32
    %c0_i32_0 = arith.constant 0 : i32
    %c0_i32_1 = arith.constant 0 : i32
    return %c0_i32, %c0_i32_0 : i32, i32
  }
  func.func @transform_5(%arg0: i32) -> (i32, i32) {
    %c0_i32 = arith.constant 0 : i32
    %c0_i32_0 = arith.constant 0 : i32
    return %arg0, %c0_i32 : i32, i32
  }
}

</mosaic_0001>

<llo_original>
// kernel: tpu_custom_call.1
$region0: #{tpu_custom_call.1}
  #allocation0 [shape = 'u32[]', space=smem, size = 0x4, offset = 0x4, fixed_abs, tag = 'smem constant byte address 0x4 - core index']
  #allocation1 [shape = 'u32[144,128]{1,0:T(1,128)}', space=vmem, size = 0x12000, scoped, tag = 'internal scratch']
  %s0 = inlined_call_operand.vmem [shape: f32[8,4], index: 0, kind: input, shape index: {}]
  %s1 = inlined_call_operand.vmem [shape: f32[4,24], index: 1, kind: input, shape index: {}]
  %s2 = inlined_call_operand.vmem [shape: f32[1,24], index: 2, kind: input, shape index: {}]
  %s3 = inlined_call_operand.vmem [shape: f32[24,2], index: 3, kind: input, shape index: {}]
  %s4 = inlined_call_operand.vmem [shape: f32[1,2], index: 4, kind: input, shape index: {}]
  %s5 = inlined_call_operand.vmem [shape: f32[8,2], index: 5, kind: output, shape index: {}]
  %s6 = sld [smem:[#allocation0]]
  $region30: #{tpu_custom_call.1} parent=0
    _
  %s8 = ssub.s32 1, %s6
  %s9 = scalar_select 0, %s8, %s6
  // Predicated region
  $region2: #{tpu_custom_call.1} parent=0 // pred_check
    _
  $region3: #{tpu_custom_call.1} parent=0 // pred_check_branch
    %11 = sbr.rel (0) target = $region5
  $region4: #{tpu_custom_call.1} parent=0 // pred_region
    _
  $region5: #{tpu_custom_call.1} parent=0 // pred_fallthru
    _
  // Predicated region
  $region6: #{tpu_custom_call.1} parent=0 // pred_check
    _
  $region7: #{tpu_custom_call.1} parent=0 // pred_check_branch
    %13 = sbr.rel (0) target = $region9
  $region8: #{tpu_custom_call.1} parent=0 // pred_region
    _
  $region9: #{tpu_custom_call.1} parent=0 // pred_fallthru
    _
  // Predicated region
  $region10: #{tpu_custom_call.1} parent=0 // pred_check
    _
  $region11: #{tpu_custom_call.1} parent=0 // pred_check_branch
    %15 = sbr.rel (0) target = $region13
  $region12: #{tpu_custom_call.1} parent=0 // pred_region
    _
  $region13: #{tpu_custom_call.1} parent=0 // pred_fallthru
    _
  // Predicated region
  $region14: #{tpu_custom_call.1} parent=0 // pred_check
    _
  $region15: #{tpu_custom_call.1} parent=0 // pred_check_branch
    %17 = sbr.rel (0) target = $region17
  $region16: #{tpu_custom_call.1} parent=0 // pred_region
    _
  $region17: #{tpu_custom_call.1} parent=0 // pred_fallthru
    _
  // Predicated region
  $region18: #{tpu_custom_call.1} parent=0 // pred_check
    _
  $region19: #{tpu_custom_call.1} parent=0 // pred_check_branch
    %19 = sbr.rel (0) target = $region21
  $region20: #{tpu_custom_call.1} parent=0 // pred_region
    _
  $region21: #{tpu_custom_call.1} parent=0 // pred_fallthru
    _
  %v20 = vld [vmem:[%s0] sm:$0xff]
  %v21 = vld [vmem:[%s1] sm:$0xf]
  %v22 = vld [vmem:[%s2] sm:$0x1]
  %v24 = vlaneseq
  %v25 = vshrl.u32 %v24, 7
  %v26 = vsub.s32 0, %v25
  %v27 = vrot.slane %v22, %v26
  %vm29 = vcmask 31744
  %v31 = vsel %vm29, %v20, 0
  %vm33 = vcmask 1043456
  %v35 = vsel %vm33, %v21, 0
  %37 = vmatprep.subr.mxu0 0.0
  %38 = vmatpush1.msra.mxu0 0.0
  %39 = vmatprep.subr.mxu0 0.0
  %40 = vmatpush1.msra.mxu0 0.0
  %41 = vmatprep.subr.mxu0 0.0
  %42 = vmatpush1.msra.mxu0 0.0
  %43 = vmatprep.subr.mxu0 0.0
  %44 = vmatpush1.msra.mxu0 0.0
  %45 = vmatprep.subr.mxu0 0.0
  %46 = vmatpush1.msra.mxu0 0.0
  %47 = vmatprep.subr.mxu0 0.0
  %48 = vmatpush1.msra.mxu0 0.0
  %49 = vmatprep.subr.mxu0 0.0
  %50 = vmatpush1.msra.mxu0 0.0
  %51 = vmatprep.subr.mxu0 0.0
  %52 = vmatpush1.msra.mxu0 0.0
  %53 = vmatprep.subr.mxu0 0.0
  %54 = vmatpush1.msra.mxu0 0.0
  %55 = vmatprep.subr.mxu0 0.0
  %56 = vmatpush1.msra.mxu0 0.0
  %57 = vmatprep.subr.mxu0 0.0
  %58 = vmatpush1.msra.mxu0 0.0
  %59 = vmatprep.subr.mxu0 0.0
  %60 = vmatpush1.msra.mxu0 0.0
  %61 = vmatprep.subr.mxu0 0.0
  %62 = vmatpush1.msra.mxu0 0.0
  %63 = vmatprep.subr.mxu0 0.0
  %64 = vmatpush1.msra.mxu0 0.0
  %65 = vmatprep.subr.mxu0 0.0
  %66 = vmatpush1.msra.mxu0 0.0
  %67 = vmatprep.subr.mxu0 0.0
  %68 = vmatpush1.msra.mxu0 %v35
  %69 = vmatprep.subr.mxu0 0.0
  %70 = vmatpush2.msra.mxu0 0.0
  %71 = vmatprep.subr.mxu0 0.0
  %72 = vmatpush2.msra.mxu0 0.0
  %73 = vmatprep.subr.mxu0 0.0
  %74 = vmatpush2.msra.mxu0 0.0
  %75 = vmatprep.subr.mxu0 0.0
  %76 = vmatpush2.msra.mxu0 0.0
  %77 = vmatprep.subr.mxu0 0.0
  %78 = vmatpush2.msra.mxu0 0.0
  %79 = vmatprep.subr.mxu0 0.0
  %80 = vmatpush2.msra.mxu0 0.0
  %81 = vmatprep.subr.mxu0 0.0
  %82 = vmatpush2.msra.mxu0 0.0
  %83 = vmatprep.subr.mxu0 0.0
  %84 = vmatpush2.msra.mxu0 0.0
  %85 = vmatprep.subr.mxu0 0.0
  %86 = vmatpush2.msra.mxu0 0.0
  %87 = vmatprep.subr.mxu0 0.0
  %88 = vmatpush2.msra.mxu0 0.0
  %89 = vmatprep.subr.mxu0 0.0
  %90 = vmatpush2.msra.mxu0 0.0
  %91 = vmatprep.subr.mxu0 0.0
  %92 = vmatpush2.msra.mxu0 0.0
  %93 = vmatprep.subr.mxu0 0.0
  %94 = vmatpush2.msra.mxu0 0.0
  %95 = vmatprep.subr.mxu0 0.0
  %96 = vmatpush2.msra.mxu0 0.0
  %97 = vmatprep.subr.mxu0 0.0
  %98 = vmatpush2.msra.mxu0 0.0
  %99 = vmatprep.subr.mxu0 0.0
  %100 = vmatpush2.msra.mxu0 0.0
  %101 = vmatprep.mubr.f32.mxu0 0.0
  %102 = vmatmul.mubr.f32.gmra.mxu0 %v31
  %v103 = vpop.f32.mrf.mxu0
  %v104 = vadd.f32 %v27, %v103
  %v105 = vpop.f32.mrf.mxu0
  %106 = vdwg.mxu0
  %v107 = vmax.f32 %v104, 0.0
  %v108 = vld [vmem:[%s3] sm:$0xff]
  %v109 = vld [vmem:[%s3 + $0x8] sm:$0xff]
  %v110 = vld [vmem:[%s3 + $0x10] sm:$0xff]
  %v111 = vld [vmem:[%s4] sm:$0x1]
  %v113 = vlaneseq
  %v114 = vshrl.u32 %v113, 7
  %v115 = vsub.s32 0, %v114
  %v116 = vrot.slane %v111, %v115
  %vm118 = vcmask 195584
  %v120 = vsel %vm118, %v107, 0
  %122 = vmatprep.subr.mxu0 0.0
  %123 = vmatpush1.msra.mxu0 0.0
  %124 = vmatprep.subr.mxu0 0.0
  %125 = vmatpush1.msra.mxu0 0.0
  %126 = vmatprep.subr.mxu0 0.0
  %127 = vmatpush1.msra.mxu0 0.0
  %128 = vmatprep.subr.mxu0 0.0
  %129 = vmatpush1.msra.mxu0 0.0
  %130 = vmatprep.subr.mxu0 0.0
  %131 = vmatpush1.msra.mxu0 0.0
  %132 = vmatprep.subr.mxu0 0.0
  %133 = vmatpush1.msra.mxu0 0.0
  %134 = vmatprep.subr.mxu0 0.0
  %135 = vmatpush1.msra.mxu0 0.0
  %136 = vmatprep.subr.mxu0 0.0
  %137 = vmatpush1.msra.mxu0 0.0
  %138 = vmatprep.subr.mxu0 0.0
  %139 = vmatpush1.msra.mxu0 0.0
  %140 = vmatprep.subr.mxu0 0.0
  %141 = vmatpush1.msra.mxu0 0.0
  %142 = vmatprep.subr.mxu0 0.0
  %143 = vmatpush1.msra.mxu0 0.0
  %144 = vmatprep.subr.mxu0 0.0
  %145 = vmatpush1.msra.mxu0 0.0
  %146 = vmatprep.subr.mxu0 0.0
  %147 = vmatpush1.msra.mxu0 0.0
  %148 = vmatprep.subr.mxu0 0.0
  %149 = vmatpush1.msra.mxu0 %v110
  %150 = vmatprep.subr.mxu0 0.0
  %151 = vmatpush1.msra.mxu0 %v109
  %152 = vmatprep.subr.mxu0 0.0
  %153 = vmatpush1.msra.mxu0 %v108
  %154 = vmatprep.subr.mxu0 0.0
  %155 = vmatpush2.msra.mxu0 0.0
  %156 = vmatprep.subr.mxu0 0.0
  %157 = vmatpush2.msra.mxu0 0.0
  %158 = vmatprep.subr.mxu0 0.0
  %159 = vmatpush2.msra.mxu0 0.0
  %160 = vmatprep.subr.mxu0 0.0
  %161 = vmatpush2.msra.mxu0 0.0
  %162 = vmatprep.subr.mxu0 0.0
  %163 = vmatpush2.msra.mxu0 0.0
  %164 = vmatprep.subr.mxu0 0.0
  %165 = vmatpush2.msra.mxu0 0.0
  %166 = vmatprep.subr.mxu0 0.0
  %167 = vmatpush2.msra.mxu0 0.0
  %168 = vmatprep.subr.mxu0 0.0
  %169 = vmatpush2.msra.mxu0 0.0
  %170 = vmatprep.subr.mxu0 0.0
  %171 = vmatpush2.msra.mxu0 0.0
  %172 = vmatprep.subr.mxu0 0.0
  %173 = vmatpush2.msra.mxu0 0.0
  %174 = vmatprep.subr.mxu0 0.0
  %175 = vmatpush2.msra.mxu0 0.0
  %176 = vmatprep.subr.mxu0 0.0
  %177 = vmatpush2.msra.mxu0 0.0
  %178 = vmatprep.subr.mxu0 0.0
  %179 = vmatpush2.msra.mxu0 0.0
  %180 = vmatprep.subr.mxu0 0.0
  %181 = vmatpush2.msra.mxu0 0.0
  %182 = vmatprep.subr.mxu0 0.0
  %183 = vmatpush2.msra.mxu0 0.0
  %184 = vmatprep.subr.mxu0 0.0
  %185 = vmatpush2.msra.mxu0 0.0
  %186 = vmatprep.mubr.f32.mxu0 0.0
  %187 = vmatmul.mubr.f32.gmra.mxu0 %v120
  %v188 = vpop.f32.mrf.mxu0
  %v189 = vadd.f32 %v116, %v188
  %v190 = vpop.f32.mrf.mxu0
  %191 = vdwg.mxu0
  %193 = vrot.lane.b32.xlu0 %v189, 1
  %v194 = vpop.permute.xlu0 %193
  %v196 = vsub.f32 %v189, %v194
  %v197 = vand.u32 2147483647, %v196
  %v198 = vsub.f32 0.0, %v197
  %v199 = vmul.f32 %v198, 1.442695
  %v200 = vpow.pop %v199
  %vm201 = vcmp.ge.f32.partialorder %v196, 0.0
  %v202 = vsel %vm201, 1.0, %v200
  %v203 = vadd.f32 %v200, 1.0
  %v204 = vrcp.pop %v203
  %v205 = vmul.f32 %v202, %v204
  %v206 = vsub.f32 1.0, %v205
  %v207 = vlaneseq
  %v208 = vand.u32 %v207, 127
  %vm209 = vcmp.eq.s32.totalorder %v208, 1
  %211 = vset.pattern.permute.xlu0 1
  %212 = vperm.xlu0 %211, %v205
  %v213 = vpop.permute.xlu0 %212
  %216 = vset.pattern.permute.xlu0 1
  %217 = vperm.xlu0 %216, %v206
  %v218 = vpop.permute.xlu0 %217
  %v220 = vsel %vm209, %v213, %v218
  %vm221 = vcmask 15360
  %222 = vst.msk [vmem:[%s5] sm:$0xff] %vm221, %v220
  // Predicated region
  $region22: #{tpu_custom_call.1} parent=0 // pred_check
    _
  $region23: #{tpu_custom_call.1} parent=0 // pred_check_branch
    %224 = sbr.rel (0) target = $region25
  $region24: #{tpu_custom_call.1} parent=0 // pred_region
    _
  $region25: #{tpu_custom_call.1} parent=0 // pred_fallthru
    _
  // Predicated region
  $region26: #{tpu_custom_call.1} parent=0 // pred_check
    _
  $region27: #{tpu_custom_call.1} parent=0 // pred_check_branch
    %226 = sbr.rel (0) target = $region29
  $region28: #{tpu_custom_call.1} parent=0 // pred_region
    _
  $region29: #{tpu_custom_call.1} parent=0 // pred_fallthru
    _

</llo_original>
